<compile_context>
chip_gen: v6e
topology: v6e:2x2x1
jax: 0.10.0
libtpu: 0.0.40
codegen_flags: <defaults>
</compile_context>

<pallas_src>
import functools

import jax
import jax.numpy as jnp
from jax.experimental import pallas as pl
from jax.experimental.pallas import tpu as pltpu

NEG_SLOPE = 0.01          # torch.nn.LeakyReLU default
LANE = 128                # TPU lane width
SUBLANE = 8               # TPU sublane height
HIDDEN = (24, 48, 96, 48, 24)


def _round_up(x, m):
    return (x + m - 1) // m * m


def _leaky_relu(z):
    # max(z, slope*z) == leaky_relu(z) exactly for 0 < slope < 1; single vmax.
    return jnp.maximum(z, NEG_SLOPE * z)


def dqn_kernel(x_ref, w_ref, o_ref, *, n_layers):
    """Whole 6-layer MLP for one batch tile.

    x_ref: [TB, 128] f32    zero-padded input tile; lane 127 is constant 1.0
    w_ref: [L, 128, 128] bf16  layer i weight [in,out] with bias in row 127
                               and W[i][127,127] = 1 (constant-lane carry)
    o_ref: [TB, 128] f32    lane-dense output (cols >= out_dim are junk/zero)
    """
    h = x_ref[...]                                   # f32 [TB, 128]
    for i in range(n_layers):                        # static unroll (6 layers)
        # bf16 MXU operands, f32 accumulation; bias arrives via the 1.0 lane.
        z = jnp.dot(h.astype(jnp.bfloat16), w_ref[i],
                    preferred_element_type=jnp.float32)
        h = _leaky_relu(z) if i < n_layers - 1 else z
    o_ref[...] = h


def pack_params(params):
    """Pack per-layer (W [in,out], b [1,out]) into one lane-aligned bf16 slab.

    Bias is folded into row LANE-1 of each layer tile; W[i][127,127]=1 keeps
    the constant-1.0 input lane alive through every layer.
    """
    n = len(params)
    w_slab = jnp.zeros((n, LANE, LANE), jnp.bfloat16)
    for i, (w, b) in enumerate(params):
        in_d, out_d = w.shape
        assert in_d < LANE and out_d < LANE, (
            "bias-fold packing requires every layer dim < 128; widen packing "
            "with K/N tiling if HIDDEN grows beyond one lane tile")
        w_slab = w_slab.at[i, :in_d, :out_d].set(w.astype(jnp.bfloat16))
        w_slab = w_slab.at[i, LANE - 1, :out_d].set(
            jnp.reshape(b, (-1,)).astype(jnp.bfloat16))
        w_slab = w_slab.at[i, LANE - 1, LANE - 1].set(1.0)
    return w_slab


@functools.partial(jax.jit, static_argnames=("layer_dims",))
def dqn_forward(x, w_slab, layer_dims):
    """x: [B, input_dim] f32; w_slab from pack_params; layer_dims incl. in/out."""
    B, in_dim = x.shape
    n_layers = len(layer_dims) - 1
    out_dim = layer_dims[-1]
    assert in_dim == layer_dims[0]
    assert w_slab.shape == (n_layers, LANE, LANE)
    assert all(d < LANE for d in layer_dims)

    # Batch tiling: one tile for small B, 128-row tiles (parallel grid) else.
    tile_b = _round_up(max(B, 1), SUBLANE) if B <= LANE else LANE
    Bp = _round_up(max(B, 1), tile_b)
    n_tiles = Bp // tile_b

    # Lane-dense padded input with a constant-1.0 column at lane 127 (picks up
    # the bias row folded into each weight tile).  Single concat+pad -> one
    # XLA fusion, eligible for input fusion into the pallas call.
    x_pad = jnp.concatenate(
        [x.astype(jnp.float32),
         jnp.zeros((B, LANE - 1 - in_dim), jnp.float32),
         jnp.ones((B, 1), jnp.float32)],
        axis=1)
    if Bp > B:
        x_pad = jnp.pad(x_pad, ((0, Bp - B), (0, 0)))

    # Padded (honest) work estimate: every layer is a [Bp,128]x[128,128] matmul.
    flops = 2 * Bp * LANE * LANE * n_layers
    bytes_accessed = x_pad.size * 4 + w_slab.size * 2 + Bp * LANE * 4

    out = pl.pallas_call(
        functools.partial(dqn_kernel, n_layers=n_layers),
        out_shape=jax.ShapeDtypeStruct((Bp, LANE), jnp.float32),
        grid=(n_tiles,),
        in_specs=[
            pl.BlockSpec((tile_b, LANE), lambda b: (b, 0)),
            # Constant block index -> weight slab stays VMEM-resident.
            pl.BlockSpec((n_layers, LANE, LANE), lambda b: (0, 0, 0)),
        ],
        out_specs=pl.BlockSpec((tile_b, LANE), lambda b: (b, 0)),
        compiler_params=pltpu.CompilerParams(
            dimension_semantics=("parallel",),      # v7x: split batch across TCs
            allow_input_fusion=[True, False],       # let XLA fuse the pad into input 0
        ),
        cost_estimate=pl.CostEstimate(flops=flops, transcendentals=0,
                                      bytes_accessed=bytes_accessed),
    )(x_pad, w_slab)
    return out[:B, :out_dim]


def init_params(key, input_dim, output_dim):
    """Deterministic init mimicking torch.nn.Linear default (U(+-1/sqrt(fan_in)))."""
    dims = (input_dim,) + HIDDEN + (output_dim,)
    params = []
    for i in range(len(dims) - 1):
        key, kw, kb = jax.random.split(key, 3)
        fan_in, fan_out = dims[i], dims[i + 1]
        bound = 1.0 / jnp.sqrt(jnp.float32(fan_in))
        w = jax.random.uniform(kw, (fan_in, fan_out), jnp.float32, -bound, bound)
        b = jax.random.uniform(kb, (1, fan_out), jnp.float32, -bound, bound)
        params.append((w, b))
    return params


def dqn_reference(x, params, mode):
    """Pure-JAX reference. mode='kernel' mirrors the kernel's bf16 operand /
    bf16 bias / f32-accumulate math; mode='f32' is full precision."""
    h = x.astype(jnp.float32)
    for i, (w, b) in enumerate(params):
        if mode == "kernel":
            z = jnp.dot(h.astype(jnp.bfloat16), w.astype(jnp.bfloat16),
                        preferred_element_type=jnp.float32)
            z = z + jnp.reshape(b, (1, -1)).astype(jnp.bfloat16).astype(jnp.float32)
        else:
            z = jnp.dot(h, w, precision=jax.lax.Precision.HIGHEST) + b
        h = _leaky_relu(z) if i < len(params) - 1 else z
    return h


if __name__ == "__main__":
    input_dim, output_dim = 16, 4
    layer_dims = (input_dim,) + HIDDEN + (output_dim,)

    key = jax.random.PRNGKey(0)
    key, kx_small, kx_grid = jax.random.split(key, 3)
    params = init_params(key, input_dim, output_dim)
    w_slab = pack_params(params)        # pack once (bias folded), reuse per call

    # Two cases: single-tile path (B=8) and multi-tile parallel grid (B=300).
    for name, batch, kx in (("small", 8, kx_small), ("grid", 300, kx_grid)):
        x = jax.random.normal(kx, (batch, input_dim), jnp.float32)
        out = jax.block_until_ready(dqn_forward(x, w_slab, layer_dims))
        assert out.shape == (batch, output_dim)
        # Tight check vs a reference using the same bf16-operand / f32-acc math.
        ref_k = dqn_reference(x, params, "kernel")
        assert jnp.allclose(out, ref_k, atol=1e-4, rtol=1e-4), (
            f"{name}: mismatch vs kernel-precision reference")
        # Loose sanity check vs full-precision f32 reference (bf16 rounding only).
        ref_f = dqn_reference(x, params, "f32")
        assert jnp.allclose(out, ref_f, atol=1e-1, rtol=1e-1), (
            f"{name}: mismatch vs f32 reference")

    print("KERNEL_OK")
</pallas_src>

<mosaic_0001>
module attributes {stable_mosaic.version = 11 : i64} {
  func.func @dqn_kernel(%arg0: i32, %arg1: memref<8x128xf32, #tpu.memory_space<vmem>>, %arg2: memref<6x128x128xbf16, #tpu.memory_space<vmem>>, %arg3: memref<8x128xf32, #tpu.memory_space<vmem>>) attributes {dimension_semantics = [#tpu.dimension_semantics<parallel>], iteration_bounds = array<i64: 1>, scalar_prefetch = 0 : i64, scratch_operands = 0 : i64, tpu.core_type = #tpu.core_type<tc>, window_params = [{transform_indices = @transform_0, window_bounds = array<i64: 8, 128>}, {pipeline_mode = #tpu.pipeline_mode<synchronous>, transform_indices = @transform_1, window_bounds = array<i64: 6, 128, 128>}, {transform_indices = @transform_2, window_bounds = array<i64: 8, 128>}]} {
    %c0 = arith.constant 0 : index
    %c0_0 = arith.constant 0 : index
    %0 = vector.load %arg1[%c0, %c0_0] : memref<8x128xf32, #tpu.memory_space<vmem>>, vector<8x128xf32>
    %1 = arith.truncf %0 : vector<8x128xf32> to vector<8x128xbf16>
    %c0_1 = arith.constant 0 : index
    %c0_2 = arith.constant 0 : index
    %c0_3 = arith.constant 0 : index
    %2 = vector.load %arg2[%c0_1, %c0_2, %c0_3] : memref<6x128x128xbf16, #tpu.memory_space<vmem>>, vector<1x128x128xbf16>
    %3 = vector.shape_cast %2 : vector<1x128x128xbf16> to vector<128x128xbf16>
    %cst = arith.constant dense<0.000000e+00> : vector<8x128xf32>
    %4 = tpu.matmul %1, %3, %cst {dimension_numbers = #tpu.dot_dimension_numbers<[1], [0], [0], [1], [0, 0, 1, 1], [], []>} : vector<8x128xbf16>, vector<128x128xbf16>, vector<8x128xf32> -> vector<8x128xf32>
    %cst_4 = arith.constant 0.00999999977 : f32
    %5 = vector.broadcast %cst_4 : f32 to vector<8x128xf32>
    %6 = arith.mulf %5, %4 : vector<8x128xf32>
    %7 = arith.maximumf %4, %6 : vector<8x128xf32>
    %8 = arith.truncf %7 : vector<8x128xf32> to vector<8x128xbf16>
    %c1 = arith.constant 1 : index
    %c0_5 = arith.constant 0 : index
    %c0_6 = arith.constant 0 : index
    %9 = vector.load %arg2[%c1, %c0_5, %c0_6] : memref<6x128x128xbf16, #tpu.memory_space<vmem>>, vector<1x128x128xbf16>
    %10 = vector.shape_cast %9 : vector<1x128x128xbf16> to vector<128x128xbf16>
    %cst_7 = arith.constant dense<0.000000e+00> : vector<8x128xf32>
    %11 = tpu.matmul %8, %10, %cst_7 {dimension_numbers = #tpu.dot_dimension_numbers<[1], [0], [0], [1], [0, 0, 1, 1], [], []>} : vector<8x128xbf16>, vector<128x128xbf16>, vector<8x128xf32> -> vector<8x128xf32>
    %cst_8 = arith.constant 0.00999999977 : f32
    %12 = vector.broadcast %cst_8 : f32 to vector<8x128xf32>
    %13 = arith.mulf %12, %11 : vector<8x128xf32>
    %14 = arith.maximumf %11, %13 : vector<8x128xf32>
    %15 = arith.truncf %14 : vector<8x128xf32> to vector<8x128xbf16>
    %c2 = arith.constant 2 : index
    %c0_9 = arith.constant 0 : index
    %c0_10 = arith.constant 0 : index
    %16 = vector.load %arg2[%c2, %c0_9, %c0_10] : memref<6x128x128xbf16, #tpu.memory_space<vmem>>, vector<1x128x128xbf16>
    %17 = vector.shape_cast %16 : vector<1x128x128xbf16> to vector<128x128xbf16>
    %cst_11 = arith.constant dense<0.000000e+00> : vector<8x128xf32>
    %18 = tpu.matmul %15, %17, %cst_11 {dimension_numbers = #tpu.dot_dimension_numbers<[1], [0], [0], [1], [0, 0, 1, 1], [], []>} : vector<8x128xbf16>, vector<128x128xbf16>, vector<8x128xf32> -> vector<8x128xf32>
    %cst_12 = arith.constant 0.00999999977 : f32
    %19 = vector.broadcast %cst_12 : f32 to vector<8x128xf32>
    %20 = arith.mulf %19, %18 : vector<8x128xf32>
    %21 = arith.maximumf %18, %20 : vector<8x128xf32>
    %22 = arith.truncf %21 : vector<8x128xf32> to vector<8x128xbf16>
    %c3 = arith.constant 3 : index
    %c0_13 = arith.constant 0 : index
    %c0_14 = arith.constant 0 : index
    %23 = vector.load %arg2[%c3, %c0_13, %c0_14] : memref<6x128x128xbf16, #tpu.memory_space<vmem>>, vector<1x128x128xbf16>
    %24 = vector.shape_cast %23 : vector<1x128x128xbf16> to vector<128x128xbf16>
    %cst_15 = arith.constant dense<0.000000e+00> : vector<8x128xf32>
    %25 = tpu.matmul %22, %24, %cst_15 {dimension_numbers = #tpu.dot_dimension_numbers<[1], [0], [0], [1], [0, 0, 1, 1], [], []>} : vector<8x128xbf16>, vector<128x128xbf16>, vector<8x128xf32> -> vector<8x128xf32>
    %cst_16 = arith.constant 0.00999999977 : f32
    %26 = vector.broadcast %cst_16 : f32 to vector<8x128xf32>
    %27 = arith.mulf %26, %25 : vector<8x128xf32>
    %28 = arith.maximumf %25, %27 : vector<8x128xf32>
    %29 = arith.truncf %28 : vector<8x128xf32> to vector<8x128xbf16>
    %c4 = arith.constant 4 : index
    %c0_17 = arith.constant 0 : index
    %c0_18 = arith.constant 0 : index
    %30 = vector.load %arg2[%c4, %c0_17, %c0_18] : memref<6x128x128xbf16, #tpu.memory_space<vmem>>, vector<1x128x128xbf16>
    %31 = vector.shape_cast %30 : vector<1x128x128xbf16> to vector<128x128xbf16>
    %cst_19 = arith.constant dense<0.000000e+00> : vector<8x128xf32>
    %32 = tpu.matmul %29, %31, %cst_19 {dimension_numbers = #tpu.dot_dimension_numbers<[1], [0], [0], [1], [0, 0, 1, 1], [], []>} : vector<8x128xbf16>, vector<128x128xbf16>, vector<8x128xf32> -> vector<8x128xf32>
    %cst_20 = arith.constant 0.00999999977 : f32
    %33 = vector.broadcast %cst_20 : f32 to vector<8x128xf32>
    %34 = arith.mulf %33, %32 : vector<8x128xf32>
    %35 = arith.maximumf %32, %34 : vector<8x128xf32>
    %36 = arith.truncf %35 : vector<8x128xf32> to vector<8x128xbf16>
    %c5 = arith.constant 5 : index
    %c0_21 = arith.constant 0 : index
    %c0_22 = arith.constant 0 : index
    %37 = vector.load %arg2[%c5, %c0_21, %c0_22] : memref<6x128x128xbf16, #tpu.memory_space<vmem>>, vector<1x128x128xbf16>
    %38 = vector.shape_cast %37 : vector<1x128x128xbf16> to vector<128x128xbf16>
    %cst_23 = arith.constant dense<0.000000e+00> : vector<8x128xf32>
    %39 = tpu.matmul %36, %38, %cst_23 {dimension_numbers = #tpu.dot_dimension_numbers<[1], [0], [0], [1], [0, 0, 1, 1], [], []>} : vector<8x128xbf16>, vector<128x128xbf16>, vector<8x128xf32> -> vector<8x128xf32>
    %c0_24 = arith.constant 0 : index
    %c0_25 = arith.constant 0 : index
    %40 = vector.load %arg3[%c0_24, %c0_25] : memref<8x128xf32, #tpu.memory_space<vmem>>, vector<8x128xf32>
    tpu.vector_store %arg3[%c0_24, %c0_25], %39 {strides = array<i32>} : memref<8x128xf32, #tpu.memory_space<vmem>>, vector<8x128xf32>,
    return
  }
  func.func @transform_0(%arg0: i32) -> (i32, i32) {
    %c0_i32 = arith.constant 0 : i32
    %c0_i32_0 = arith.constant 0 : i32
    return %arg0, %c0_i32 : i32, i32
  }
  func.func @transform_1(%arg0: i32) -> (i32, i32, i32) {
    %c0_i32 = arith.constant 0 : i32
    %c0_i32_0 = arith.constant 0 : i32
    %c0_i32_1 = arith.constant 0 : i32
    %c0_i32_2 = arith.constant 0 : i32
    return %c0_i32, %c0_i32_0, %c0_i32_1 : i32, i32, i32
  }
  func.func @transform_2(%arg0: i32) -> (i32, i32) {
    %c0_i32 = arith.constant 0 : i32
    %c0_i32_0 = arith.constant 0 : i32
    return %arg0, %c0_i32 : i32, i32
  }
}

</mosaic_0001>

<llo_original>
// kernel: dqn_forward.2
$region0: #{dqn_forward.2}
  #allocation0 [shape = 'u32[]', space=smem, size = 0x4, offset = 0x4, fixed_abs, tag = 'smem constant byte address 0x4 - core index']
  #allocation1 [shape = 'u32[144,128]{1,0:T(1,128)}', space=vmem, size = 0x12000, scoped, tag = 'internal scratch']
  #allocation2 [shape = 'u32[2048]{0}', space=vmem, size = 0x2000, scoped, tag = 'scoped memory for dqn_forward.2']
  #allocation3 [shape = 'u32[2048]{0}', space=vmem, size = 0x2000, scoped, tag = 'scoped memory for dqn_forward.2']
  #allocation4 [shape = 'u32[2048]{0}', space=vmem, size = 0x2000, scoped, tag = 'scoped memory for dqn_forward.2']
  #allocation5 [shape = 'u32[2048]{0}', space=vmem, size = 0x2000, scoped, tag = 'scoped memory for dqn_forward.2']
  #allocation6 [shape = 'u32[2048]{0}', space=vmem, size = 0x2000, scoped, tag = 'scoped memory for dqn_forward.2']
  %s0 = inlined_call_operand.hbm [shape: bf16[6,128,128], index: 0, kind: input, shape index: {}]
  %s1 = inlined_call_operand.vmem [shape: f32[8,16], index: 1, kind: input, shape index: {}]
  %s2 = inlined_call_operand.<no memory space> [shape: f32[], index: 2, kind: input, shape index: {}]
  %s3 = inlined_call_operand.vmem [shape: f32[128], index: 3, kind: input, shape index: {}]
  %s4 = inlined_call_operand.vmem [shape: f32[128], index: 4, kind: input, shape index: {}]
  %s5 = inlined_call_operand.vmem [shape: f32[8,128], index: 5, kind: output, shape index: {}]
  %s6 = sld [smem:[#allocation0]]
  $region30: #{dqn_forward.2} parent=0
    _
  %s8 = ssub.s32 1, %s6
  %s9 = scalar_select 0, %s8, %s6
  %v10 = vstv %s2
  $region1: #{dqn_forward.2} parent=0
    #allocation7 [shape = 'u8[196608]{0}', space=vmem, size = 0x30000, scoped, tag = 'input window, operand 1, single buffered']
    #allocation8 [shape = 's32[1]{0}', space=sflag, size = 0x4, scoped, tag = 'scoped memory for dqn_forward.2']
    #allocation9 [shape = 'u8[4096]{0}', space=vmem, size = 0x1000, dematerialized = true, scoped, tag = 'FusionAdapter Buffer %fusion.1 = f32[8,128]{1,0:T(8,128)} fusion(%param_1.12, %param_2.7, %param_3.5, %param_4.2), kind=kLoop, calls=%fused_computation.1.clone, metadata={op_name="jit(dqn_forward)/concatenate" stack_frame_id=8}']
    %11 = vsyncpa [#allocation8], 0
    // Predicated region
    $region2: #{dqn_forward.2} parent=1 // pred_check
      _
    $region3: #{dqn_forward.2} parent=1 // pred_check_branch
      %13 = sbr.rel (0) target = $region5
    $region4: #{dqn_forward.2} parent=1 // pred_region
      _
    $region5: #{dqn_forward.2} parent=1 // pred_fallthru
      _
    // Predicated region
    $region6: #{dqn_forward.2} parent=1 // pred_check
      _
    $region7: #{dqn_forward.2} parent=1 // pred_check_branch
      %15 = sbr.rel (0) target = $region9
    $region8: #{dqn_forward.2} parent=1 // pred_region
      _
    $region9: #{dqn_forward.2} parent=1 // pred_fallthru
      _
    // Predicated region
    $region10: #{dqn_forward.2} parent=1 // pred_check
      _
    $region11: #{dqn_forward.2} parent=1 // pred_check_branch
      %17 = sbr.rel (0) target = $region13
    $region12: #{dqn_forward.2} parent=1 // pred_region
      _
    $region13: #{dqn_forward.2} parent=1 // pred_fallthru
      _
    // Predicated region
    $region14: #{dqn_forward.2} parent=1 // pred_check
      _
    $region15: #{dqn_forward.2} parent=1 // pred_check_branch
      %19 = sbr.rel (0) target = $region17
    $region16: #{dqn_forward.2} parent=1 // pred_region
      %s21 = ssub.s32 6144, 6144
      %22 = vsyncadd [#allocation8], %s21
      %s23 = sshll.u32 [#allocation7], 4
      %s24 = int_to_ptr.vmem [resolvable:$true] %s23
      %29 = dma.hbm_to_vmem [thread:$0]  %s0, 6144, %s24, [#allocation8], 64, 64, 4
    $region17: #{dqn_forward.2} parent=1 // pred_fallthru
      _
    // Predicated region
    $region18: #{dqn_forward.2} parent=1 // pred_check
      _
    $region19: #{dqn_forward.2} parent=1 // pred_check_branch
      %31 = sbr.rel (0) target = $region21
    $region20: #{dqn_forward.2} parent=1 // pred_region
      %32 = dma.done [#allocation8], 6144
    $region21: #{dqn_forward.2} parent=1 // pred_fallthru
      _
    %v33 = vld [vmem:[%s1] sm:$0xff]
    %v34 = vlaneseq
    %v35 = vand.u32 %v34, 127
    %vm37 = vcmp.lt.s32.totalorder %v35, 16
    %v38 = vsel %vm37, %v33, %v10
    %v39 = vld [vmem:[%s3] ss:$0 sm:$0xff]
    %v40 = vld [vmem:[%s4] ss:$0 sm:$0xff]
    %41 = xla_tuple %v38, %v40
    %42 = xla_tuple %41
    %v43 = vmax.f32 %v38, %v40
    %44 = xla_tuple %v43
    %45 = xla_tuple %v43, %v39
    %46 = xla_tuple %45
    %v47 = vmax.f32 %v43, %v39
    %48 = xla_tuple %v47
    %s50 = ssub.s32 256, 1
    %51 = vst [vmem:[#allocation9] sm:%s50] %v47
    %v53 = vld [vmem:[#allocation9] sm:$0xff]
    %v54 = vpack.c.bf16 %v53, %v53
    %v55 = vld [vmem:[#allocation7] sm:$0xf]
    %v56 = vld [vmem:[#allocation7 + $0x4] sm:$0xf]
    %v57 = vld [vmem:[#allocation7 + $0x8] sm:$0xf]
    %v58 = vld [vmem:[#allocation7 + $0xc] sm:$0xf]
    %v59 = vld [vmem:[#allocation7 + $0x10] sm:$0xf]
    %v60 = vld [vmem:[#allocation7 + $0x14] sm:$0xf]
    %v61 = vld [vmem:[#allocation7 + $0x18] sm:$0xf]
    %v62 = vld [vmem:[#allocation7 + $0x1c] sm:$0xf]
    %v63 = vld [vmem:[#allocation7 + $0x20] sm:$0xf]
    %v64 = vld [vmem:[#allocation7 + $0x24] sm:$0xf]
    %v65 = vld [vmem:[#allocation7 + $0x28] sm:$0xf]
    %v66 = vld [vmem:[#allocation7 + $0x2c] sm:$0xf]
    %v67 = vld [vmem:[#allocation7 + $0x30] sm:$0xf]
    %v68 = vld [vmem:[#allocation7 + $0x34] sm:$0xf]
    %v69 = vld [vmem:[#allocation7 + $0x38] sm:$0xf]
    %v70 = vld [vmem:[#allocation7 + $0x3c] sm:$0xf]
    %v87 = vunpack.c.l.b16 %v55
    %v88 = vunpack.c.l.b16 %v56
    %v89 = vunpack.c.l.b16 %v57
    %v90 = vunpack.c.l.b16 %v58
    %v91 = vunpack.c.l.b16 %v59
    %v92 = vunpack.c.l.b16 %v60
    %v93 = vunpack.c.l.b16 %v61
    %v94 = vunpack.c.l.b16 %v62
    %v95 = vunpack.c.l.b16 %v63
    %v96 = vunpack.c.l.b16 %v64
    %v97 = vunpack.c.l.b16 %v65
    %v98 = vunpack.c.l.b16 %v66
    %v99 = vunpack.c.l.b16 %v67
    %v100 = vunpack.c.l.b16 %v68
    %v101 = vunpack.c.l.b16 %v69
    %v102 = vunpack.c.l.b16 %v70
    %v103 = vpack.c.b16 %v88, %v87
    %v104 = vpack.c.b16 %v90, %v89
    %v105 = vpack.c.b16 %v92, %v91
    %v106 = vpack.c.b16 %v94, %v93
    %v107 = vpack.c.b16 %v96, %v95
    %v108 = vpack.c.b16 %v98, %v97
    %v109 = vpack.c.b16 %v100, %v99
    %v110 = vpack.c.b16 %v102, %v101
    %119 = vmatprep.subr.bf16.mxu0 0
    %120 = vmatpush1.bf16.msra.mxu0 %v110
    %121 = vmatprep.subr.bf16.mxu0 0
    %122 = vmatpush1.bf16.msra.mxu0 %v109
    %123 = vmatprep.subr.bf16.mxu0 0
    %124 = vmatpush1.bf16.msra.mxu0 %v108
    %125 = vmatprep.subr.bf16.mxu0 0
    %126 = vmatpush1.bf16.msra.mxu0 %v107
    %127 = vmatprep.subr.bf16.mxu0 0
    %128 = vmatpush1.bf16.msra.mxu0 %v106
    %129 = vmatprep.subr.bf16.mxu0 0
    %130 = vmatpush1.bf16.msra.mxu0 %v105
    %131 = vmatprep.subr.bf16.mxu0 0
    %132 = vmatpush1.bf16.msra.mxu0 %v104
    %133 = vmatprep.subr.bf16.mxu0 0
    %134 = vmatpush1.bf16.msra.mxu0 %v103
    %135 = vmatprep.subr.bf16.mxu0 0
    %136 = vmatpush2.bf16.msra.mxu0 0
    %137 = vmatprep.subr.bf16.mxu0 0
    %138 = vmatpush2.bf16.msra.mxu0 0
    %139 = vmatprep.subr.bf16.mxu0 0
    %140 = vmatpush2.bf16.msra.mxu0 0
    %141 = vmatprep.subr.bf16.mxu0 0
    %142 = vmatpush2.bf16.msra.mxu0 0
    %143 = vmatprep.subr.bf16.mxu0 0
    %144 = vmatpush2.bf16.msra.mxu0 0
    %145 = vmatprep.subr.bf16.mxu0 0
    %146 = vmatpush2.bf16.msra.mxu0 0
    %147 = vmatprep.subr.bf16.mxu0 0
    %148 = vmatpush2.bf16.msra.mxu0 0
    %149 = vmatprep.subr.bf16.mxu0 0
    %150 = vmatpush2.bf16.msra.mxu0 0
    %151 = vmatprep.mubr.bf16.mxu0 0
    %152 = vmatmul.mubr.bf16.gmra.mxu0 %v54
    %v153 = vpop.f32.mrf.mxu0
    %v154 = vadd.f32 0.0, %v153
    %v155 = vpop.f32.mrf.mxu0
    %v156 = vpop.f32.mrf.mxu0
    %v157 = vpop.f32.mrf.mxu0
    %158 = vdwg.mxu0
    %v159 = vmul.f32 %v154, 0.01
    %v160 = vmax.f32 %v154, %v159
    %v161 = vpack.c.bf16 %v160, %v160
    %s162 = scalar_lea.vmem [#allocation7], 64
    %v163 = vld [vmem:[%s162] sm:$0xf]
    %v164 = vld [vmem:[%s162 + $0x4] sm:$0xf]
    %v165 = vld [vmem:[%s162 + $0x8] sm:$0xf]
    %v166 = vld [vmem:[%s162 + $0xc] sm:$0xf]
    %v167 = vld [vmem:[%s162 + $0x10] sm:$0xf]
    %v168 = vld [vmem:[%s162 + $0x14] sm:$0xf]
    %v169 = vld [vmem:[%s162 + $0x18] sm:$0xf]
    %v170 = vld [vmem:[%s162 + $0x1c] sm:$0xf]
    %v171 = vld [vmem:[%s162 + $0x20] sm:$0xf]
    %v172 = vld [vmem:[%s162 + $0x24] sm:$0xf]
    %v173 = vld [vmem:[%s162 + $0x28] sm:$0xf]
    %v174 = vld [vmem:[%s162 + $0x2c] sm:$0xf]
    %v175 = vld [vmem:[%s162 + $0x30] sm:$0xf]
    %v176 = vld [vmem:[%s162 + $0x34] sm:$0xf]
    %v177 = vld [vmem:[%s162 + $0x38] sm:$0xf]
    %v178 = vld [vmem:[%s162 + $0x3c] sm:$0xf]
    %v195 = vunpack.c.l.b16 %v163
    %v196 = vunpack.c.l.b16 %v164
    %v197 = vunpack.c.l.b16 %v165
    %v198 = vunpack.c.l.b16 %v166
    %v199 = vunpack.c.l.b16 %v167
    %v200 = vunpack.c.l.b16 %v168
    %v201 = vunpack.c.l.b16 %v169
    %v202 = vunpack.c.l.b16 %v170
    %v203 = vunpack.c.l.b16 %v171
    %v204 = vunpack.c.l.b16 %v172
    %v205 = vunpack.c.l.b16 %v173
    %v206 = vunpack.c.l.b16 %v174
    %v207 = vunpack.c.l.b16 %v175
    %v208 = vunpack.c.l.b16 %v176
    %v209 = vunpack.c.l.b16 %v177
    %v210 = vunpack.c.l.b16 %v178
    %v211 = vpack.c.b16 %v196, %v195
    %v212 = vpack.c.b16 %v198, %v197
    %v213 = vpack.c.b16 %v200, %v199
    %v214 = vpack.c.b16 %v202, %v201
    %v215 = vpack.c.b16 %v204, %v203
    %v216 = vpack.c.b16 %v206, %v205
    %v217 = vpack.c.b16 %v208, %v207
    %v218 = vpack.c.b16 %v210, %v209
    %227 = vmatprep.subr.bf16.mxu0 0
    %228 = vmatpush1.bf16.msra.mxu0 %v218
    %229 = vmatprep.subr.bf16.mxu0 0
    %230 = vmatpush1.bf16.msra.mxu0 %v217
    %231 = vmatprep.subr.bf16.mxu0 0
    %232 = vmatpush1.bf16.msra.mxu0 %v216
    %233 = vmatprep.subr.bf16.mxu0 0
    %234 = vmatpush1.bf16.msra.mxu0 %v215
    %235 = vmatprep.subr.bf16.mxu0 0
    %236 = vmatpush1.bf16.msra.mxu0 %v214
    %237 = vmatprep.subr.bf16.mxu0 0
    %238 = vmatpush1.bf16.msra.mxu0 %v213
    %239 = vmatprep.subr.bf16.mxu0 0
    %240 = vmatpush1.bf16.msra.mxu0 %v212
    %241 = vmatprep.subr.bf16.mxu0 0
    %242 = vmatpush1.bf16.msra.mxu0 %v211
    %243 = vmatprep.subr.bf16.mxu0 0
    %244 = vmatpush2.bf16.msra.mxu0 0
    %245 = vmatprep.subr.bf16.mxu0 0
    %246 = vmatpush2.bf16.msra.mxu0 0
    %247 = vmatprep.subr.bf16.mxu0 0
    %248 = vmatpush2.bf16.msra.mxu0 0
    %249 = vmatprep.subr.bf16.mxu0 0
    %250 = vmatpush2.bf16.msra.mxu0 0
    %251 = vmatprep.subr.bf16.mxu0 0
    %252 = vmatpush2.bf16.msra.mxu0 0
    %253 = vmatprep.subr.bf16.mxu0 0
    %254 = vmatpush2.bf16.msra.mxu0 0
    %255 = vmatprep.subr.bf16.mxu0 0
    %256 = vmatpush2.bf16.msra.mxu0 0
    %257 = vmatprep.subr.bf16.mxu0 0
    %258 = vmatpush2.bf16.msra.mxu0 0
    %259 = vmatprep.mubr.bf16.mxu0 0
    %260 = vmatmul.mubr.bf16.gmra.mxu0 %v161
    %v261 = vpop.f32.mrf.mxu0
    %v262 = vadd.f32 0.0, %v261
    %v263 = vpop.f32.mrf.mxu0
    %v264 = vpop.f32.mrf.mxu0
    %v265 = vpop.f32.mrf.mxu0
    %266 = vdwg.mxu0
    %v267 = vmul.f32 %v262, 0.01
    %v268 = vmax.f32 %v262, %v267
    %v269 = vpack.c.bf16 %v268, %v268
    %s270 = scalar_lea.vmem [#allocation7], 128
    %v271 = vld [vmem:[%s270] sm:$0xf]
    %v272 = vld [vmem:[%s270 + $0x4] sm:$0xf]
    %v273 = vld [vmem:[%s270 + $0x8] sm:$0xf]
    %v274 = vld [vmem:[%s270 + $0xc] sm:$0xf]
    %v275 = vld [vmem:[%s270 + $0x10] sm:$0xf]
    %v276 = vld [vmem:[%s270 + $0x14] sm:$0xf]
    %v277 = vld [vmem:[%s270 + $0x18] sm:$0xf]
    %v278 = vld [vmem:[%s270 + $0x1c] sm:$0xf]
    %v279 = vld [vmem:[%s270 + $0x20] sm:$0xf]
    %v280 = vld [vmem:[%s270 + $0x24] sm:$0xf]
    %v281 = vld [vmem:[%s270 + $0x28] sm:$0xf]
    %v282 = vld [vmem:[%s270 + $0x2c] sm:$0xf]
    %v283 = vld [vmem:[%s270 + $0x30] sm:$0xf]
    %v284 = vld [vmem:[%s270 + $0x34] sm:$0xf]
    %v285 = vld [vmem:[%s270 + $0x38] sm:$0xf]
    %v286 = vld [vmem:[%s270 + $0x3c] sm:$0xf]
    %v303 = vunpack.c.l.b16 %v271
    %v304 = vunpack.c.l.b16 %v272
    %v305 = vunpack.c.l.b16 %v273
    %v306 = vunpack.c.l.b16 %v274
    %v307 = vunpack.c.l.b16 %v275
    %v308 = vunpack.c.l.b16 %v276
    %v309 = vunpack.c.l.b16 %v277
    %v310 = vunpack.c.l.b16 %v278
    %v311 = vunpack.c.l.b16 %v279
    %v312 = vunpack.c.l.b16 %v280
    %v313 = vunpack.c.l.b16 %v281
    %v314 = vunpack.c.l.b16 %v282
    %v315 = vunpack.c.l.b16 %v283
    %v316 = vunpack.c.l.b16 %v284
    %v317 = vunpack.c.l.b16 %v285
    %v318 = vunpack.c.l.b16 %v286
    %v319 = vpack.c.b16 %v304, %v303
    %v320 = vpack.c.b16 %v306, %v305
    %v321 = vpack.c.b16 %v308, %v307
    %v322 = vpack.c.b16 %v310, %v309
    %v323 = vpack.c.b16 %v312, %v311
    %v324 = vpack.c.b16 %v314, %v313
    %v325 = vpack.c.b16 %v316, %v315
    %v326 = vpack.c.b16 %v318, %v317
    %335 = vmatprep.subr.bf16.mxu0 0
    %336 = vmatpush1.bf16.msra.mxu0 %v326
    %337 = vmatprep.subr.bf16.mxu0 0
    %338 = vmatpush1.bf16.msra.mxu0 %v325
    %339 = vmatprep.subr.bf16.mxu0 0
    %340 = vmatpush1.bf16.msra.mxu0 %v324
    %341 = vmatprep.subr.bf16.mxu0 0
    %342 = vmatpush1.bf16.msra.mxu0 %v323
    %343 = vmatprep.subr.bf16.mxu0 0
    %344 = vmatpush1.bf16.msra.mxu0 %v322
    %345 = vmatprep.subr.bf16.mxu0 0
    %346 = vmatpush1.bf16.msra.mxu0 %v321
    %347 = vmatprep.subr.bf16.mxu0 0
    %348 = vmatpush1.bf16.msra.mxu0 %v320
    %349 = vmatprep.subr.bf16.mxu0 0
    %350 = vmatpush1.bf16.msra.mxu0 %v319
    %351 = vmatprep.subr.bf16.mxu0 0
    %352 = vmatpush2.bf16.msra.mxu0 0
    %353 = vmatprep.subr.bf16.mxu0 0
    %354 = vmatpush2.bf16.msra.mxu0 0
    %355 = vmatprep.subr.bf16.mxu0 0
    %356 = vmatpush2.bf16.msra.mxu0 0
    %357 = vmatprep.subr.bf16.mxu0 0
    %358 = vmatpush2.bf16.msra.mxu0 0
    %359 = vmatprep.subr.bf16.mxu0 0
    %360 = vmatpush2.bf16.msra.mxu0 0
    %361 = vmatprep.subr.bf16.mxu0 0
    %362 = vmatpush2.bf16.msra.mxu0 0
    %363 = vmatprep.subr.bf16.mxu0 0
    %364 = vmatpush2.bf16.msra.mxu0 0
    %365 = vmatprep.subr.bf16.mxu0 0
    %366 = vmatpush2.bf16.msra.mxu0 0
    %367 = vmatprep.mubr.bf16.mxu0 0
    %368 = vmatmul.mubr.bf16.gmra.mxu0 %v269
    %v369 = vpop.f32.mrf.mxu0
    %v370 = vadd.f32 0.0, %v369
    %v371 = vpop.f32.mrf.mxu0
    %v372 = vpop.f32.mrf.mxu0
    %v373 = vpop.f32.mrf.mxu0
    %374 = vdwg.mxu0
    %v375 = vmul.f32 %v370, 0.01
    %v376 = vmax.f32 %v370, %v375
    %v377 = vpack.c.bf16 %v376, %v376
    %s378 = scalar_lea.vmem [#allocation7], 192
    %v379 = vld [vmem:[%s378] sm:$0xf]
    %v380 = vld [vmem:[%s378 + $0x4] sm:$0xf]
    %v381 = vld [vmem:[%s378 + $0x8] sm:$0xf]
    %v382 = vld [vmem:[%s378 + $0xc] sm:$0xf]
    %v383 = vld [vmem:[%s378 + $0x10] sm:$0xf]
    %v384 = vld [vmem:[%s378 + $0x14] sm:$0xf]
    %v385 = vld [vmem:[%s378 + $0x18] sm:$0xf]
    %v386 = vld [vmem:[%s378 + $0x1c] sm:$0xf]
    %v387 = vld [vmem:[%s378 + $0x20] sm:$0xf]
    %v388 = vld [vmem:[%s378 + $0x24] sm:$0xf]
    %v389 = vld [vmem:[%s378 + $0x28] sm:$0xf]
    %v390 = vld [vmem:[%s378 + $0x2c] sm:$0xf]
    %v391 = vld [vmem:[%s378 + $0x30] sm:$0xf]
    %v392 = vld [vmem:[%s378 + $0x34] sm:$0xf]
    %v393 = vld [vmem:[%s378 + $0x38] sm:$0xf]
    %v394 = vld [vmem:[%s378 + $0x3c] sm:$0xf]
    %v411 = vunpack.c.l.b16 %v379
    %v412 = vunpack.c.l.b16 %v380
    %v413 = vunpack.c.l.b16 %v381
    %v414 = vunpack.c.l.b16 %v382
    %v415 = vunpack.c.l.b16 %v383
    %v416 = vunpack.c.l.b16 %v384
    %v417 = vunpack.c.l.b16 %v385
    %v418 = vunpack.c.l.b16 %v386
    %v419 = vunpack.c.l.b16 %v387
    %v420 = vunpack.c.l.b16 %v388
    %v421 = vunpack.c.l.b16 %v389
    %v422 = vunpack.c.l.b16 %v390
    %v423 = vunpack.c.l.b16 %v391
    %v424 = vunpack.c.l.b16 %v392
    %v425 = vunpack.c.l.b16 %v393
    %v426 = vunpack.c.l.b16 %v394
    %v427 = vpack.c.b16 %v412, %v411
    %v428 = vpack.c.b16 %v414, %v413
    %v429 = vpack.c.b16 %v416, %v415
    %v430 = vpack.c.b16 %v418, %v417
    %v431 = vpack.c.b16 %v420, %v419
    %v432 = vpack.c.b16 %v422, %v421
    %v433 = vpack.c.b16 %v424, %v423
    %v434 = vpack.c.b16 %v426, %v425
    %443 = vmatprep.subr.bf16.mxu0 0
    %444 = vmatpush1.bf16.msra.mxu0 %v434
    %445 = vmatprep.subr.bf16.mxu0 0
    %446 = vmatpush1.bf16.msra.mxu0 %v433
    %447 = vmatprep.subr.bf16.mxu0 0
    %448 = vmatpush1.bf16.msra.mxu0 %v432
    %449 = vmatprep.subr.bf16.mxu0 0
    %450 = vmatpush1.bf16.msra.mxu0 %v431
    %451 = vmatprep.subr.bf16.mxu0 0
    %452 = vmatpush1.bf16.msra.mxu0 %v430
    %453 = vmatprep.subr.bf16.mxu0 0
    %454 = vmatpush1.bf16.msra.mxu0 %v429
    %455 = vmatprep.subr.bf16.mxu0 0
    %456 = vmatpush1.bf16.msra.mxu0 %v428
    %457 = vmatprep.subr.bf16.mxu0 0
    %458 = vmatpush1.bf16.msra.mxu0 %v427
    %459 = vmatprep.subr.bf16.mxu0 0
    %460 = vmatpush2.bf16.msra.mxu0 0
    %461 = vmatprep.subr.bf16.mxu0 0
    %462 = vmatpush2.bf16.msra.mxu0 0
    %463 = vmatprep.subr.bf16.mxu0 0
    %464 = vmatpush2.bf16.msra.mxu0 0
    %465 = vmatprep.subr.bf16.mxu0 0
    %466 = vmatpush2.bf16.msra.mxu0 0
    %467 = vmatprep.subr.bf16.mxu0 0
    %468 = vmatpush2.bf16.msra.mxu0 0
    %469 = vmatprep.subr.bf16.mxu0 0
    %470 = vmatpush2.bf16.msra.mxu0 0
    %471 = vmatprep.subr.bf16.mxu0 0
    %472 = vmatpush2.bf16.msra.mxu0 0
    %473 = vmatprep.subr.bf16.mxu0 0
    %474 = vmatpush2.bf16.msra.mxu0 0
    %475 = vmatprep.mubr.bf16.mxu0 0
    %476 = vmatmul.mubr.bf16.gmra.mxu0 %v377
    %v477 = vpop.f32.mrf.mxu0
    %v478 = vadd.f32 0.0, %v477
    %v479 = vpop.f32.mrf.mxu0
    %v480 = vpop.f32.mrf.mxu0
    %v481 = vpop.f32.mrf.mxu0
    %482 = vdwg.mxu0
    %v483 = vmul.f32 %v478, 0.01
    %v484 = vmax.f32 %v478, %v483
    %v485 = vpack.c.bf16 %v484, %v484
    %s486 = scalar_lea.vmem [#allocation7], 256
    %v487 = vld [vmem:[%s486] sm:$0xf]
    %v488 = vld [vmem:[%s486 + $0x4] sm:$0xf]
    %v489 = vld [vmem:[%s486 + $0x8] sm:$0xf]
    %v490 = vld [vmem:[%s486 + $0xc] sm:$0xf]
    %v491 = vld [vmem:[%s486 + $0x10] sm:$0xf]
    %v492 = vld [vmem:[%s486 + $0x14] sm:$0xf]
    %v493 = vld [vmem:[%s486 + $0x18] sm:$0xf]
    %v494 = vld [vmem:[%s486 + $0x1c] sm:$0xf]
    %v495 = vld [vmem:[%s486 + $0x20] sm:$0xf]
    %v496 = vld [vmem:[%s486 + $0x24] sm:$0xf]
    %v497 = vld [vmem:[%s486 + $0x28] sm:$0xf]
    %v498 = vld [vmem:[%s486 + $0x2c] sm:$0xf]
    %v499 = vld [vmem:[%s486 + $0x30] sm:$0xf]
    %v500 = vld [vmem:[%s486 + $0x34] sm:$0xf]
    %v501 = vld [vmem:[%s486 + $0x38] sm:$0xf]
    %v502 = vld [vmem:[%s486 + $0x3c] sm:$0xf]
    %v519 = vunpack.c.l.b16 %v487
    %v520 = vunpack.c.l.b16 %v488
    %v521 = vunpack.c.l.b16 %v489
    %v522 = vunpack.c.l.b16 %v490
    %v523 = vunpack.c.l.b16 %v491
    %v524 = vunpack.c.l.b16 %v492
    %v525 = vunpack.c.l.b16 %v493
    %v526 = vunpack.c.l.b16 %v494
    %v527 = vunpack.c.l.b16 %v495
    %v528 = vunpack.c.l.b16 %v496
    %v529 = vunpack.c.l.b16 %v497
    %v530 = vunpack.c.l.b16 %v498
    %v531 = vunpack.c.l.b16 %v499
    %v532 = vunpack.c.l.b16 %v500
    %v533 = vunpack.c.l.b16 %v501
    %v534 = vunpack.c.l.b16 %v502
    %v535 = vpack.c.b16 %v520, %v519
    %v536 = vpack.c.b16 %v522, %v521
    %v537 = vpack.c.b16 %v524, %v523
    %v538 = vpack.c.b16 %v526, %v525
    %v539 = vpack.c.b16 %v528, %v527
    %v540 = vpack.c.b16 %v530, %v529
    %v541 = vpack.c.b16 %v532, %v531
    %v542 = vpack.c.b16 %v534, %v533
    %551 = vmatprep.subr.bf16.mxu0 0
    %552 = vmatpush1.bf16.msra.mxu0 %v542
    %553 = vmatprep.subr.bf16.mxu0 0
    %554 = vmatpush1.bf16.msra.mxu0 %v541
    %555 = vmatprep.subr.bf16.mxu0 0
    %556 = vmatpush1.bf16.msra.mxu0 %v540
    %557 = vmatprep.subr.bf16.mxu0 0
    %558 = vmatpush1.bf16.msra.mxu0 %v539
    %559 = vmatprep.subr.bf16.mxu0 0
    %560 = vmatpush1.bf16.msra.mxu0 %v538
    %561 = vmatprep.subr.bf16.mxu0 0
    %562 = vmatpush1.bf16.msra.mxu0 %v537
    %563 = vmatprep.subr.bf16.mxu0 0
    %564 = vmatpush1.bf16.msra.mxu0 %v536
    %565 = vmatprep.subr.bf16.mxu0 0
    %566 = vmatpush1.bf16.msra.mxu0 %v535
    %567 = vmatprep.subr.bf16.mxu0 0
    %568 = vmatpush2.bf16.msra.mxu0 0
    %569 = vmatprep.subr.bf16.mxu0 0
    %570 = vmatpush2.bf16.msra.mxu0 0
    %571 = vmatprep.subr.bf16.mxu0 0
    %572 = vmatpush2.bf16.msra.mxu0 0
    %573 = vmatprep.subr.bf16.mxu0 0
    %574 = vmatpush2.bf16.msra.mxu0 0
    %575 = vmatprep.subr.bf16.mxu0 0
    %576 = vmatpush2.bf16.msra.mxu0 0
    %577 = vmatprep.subr.bf16.mxu0 0
    %578 = vmatpush2.bf16.msra.mxu0 0
    %579 = vmatprep.subr.bf16.mxu0 0
    %580 = vmatpush2.bf16.msra.mxu0 0
    %581 = vmatprep.subr.bf16.mxu0 0
    %582 = vmatpush2.bf16.msra.mxu0 0
    %583 = vmatprep.mubr.bf16.mxu0 0
    %584 = vmatmul.mubr.bf16.gmra.mxu0 %v485
    %v585 = vpop.f32.mrf.mxu0
    %v586 = vadd.f32 0.0, %v585
    %v587 = vpop.f32.mrf.mxu0
    %v588 = vpop.f32.mrf.mxu0
    %v589 = vpop.f32.mrf.mxu0
    %590 = vdwg.mxu0
    %v591 = vmul.f32 %v586, 0.01
    %v592 = vmax.f32 %v586, %v591
    %v593 = vpack.c.bf16 %v592, %v592
    %s594 = scalar_lea.vmem [#allocation7], 320
    %v595 = vld [vmem:[%s594] sm:$0xf]
    %v596 = vld [vmem:[%s594 + $0x4] sm:$0xf]
    %v597 = vld [vmem:[%s594 + $0x8] sm:$0xf]
    %v598 = vld [vmem:[%s594 + $0xc] sm:$0xf]
    %v599 = vld [vmem:[%s594 + $0x10] sm:$0xf]
    %v600 = vld [vmem:[%s594 + $0x14] sm:$0xf]
    %v601 = vld [vmem:[%s594 + $0x18] sm:$0xf]
    %v602 = vld [vmem:[%s594 + $0x1c] sm:$0xf]
    %v603 = vld [vmem:[%s594 + $0x20] sm:$0xf]
    %v604 = vld [vmem:[%s594 + $0x24] sm:$0xf]
    %v605 = vld [vmem:[%s594 + $0x28] sm:$0xf]
    %v606 = vld [vmem:[%s594 + $0x2c] sm:$0xf]
    %v607 = vld [vmem:[%s594 + $0x30] sm:$0xf]
    %v608 = vld [vmem:[%s594 + $0x34] sm:$0xf]
    %v609 = vld [vmem:[%s594 + $0x38] sm:$0xf]
    %v610 = vld [vmem:[%s594 + $0x3c] sm:$0xf]
    %v627 = vunpack.c.l.b16 %v595
    %v628 = vunpack.c.l.b16 %v596
    %v629 = vunpack.c.l.b16 %v597
    %v630 = vunpack.c.l.b16 %v598
    %v631 = vunpack.c.l.b16 %v599
    %v632 = vunpack.c.l.b16 %v600
    %v633 = vunpack.c.l.b16 %v601
    %v634 = vunpack.c.l.b16 %v602
    %v635 = vunpack.c.l.b16 %v603
    %v636 = vunpack.c.l.b16 %v604
    %v637 = vunpack.c.l.b16 %v605
    %v638 = vunpack.c.l.b16 %v606
    %v639 = vunpack.c.l.b16 %v607
    %v640 = vunpack.c.l.b16 %v608
    %v641 = vunpack.c.l.b16 %v609
    %v642 = vunpack.c.l.b16 %v610
    %v643 = vpack.c.b16 %v628, %v627
    %v644 = vpack.c.b16 %v630, %v629
    %v645 = vpack.c.b16 %v632, %v631
    %v646 = vpack.c.b16 %v634, %v633
    %v647 = vpack.c.b16 %v636, %v635
    %v648 = vpack.c.b16 %v638, %v637
    %v649 = vpack.c.b16 %v640, %v639
    %v650 = vpack.c.b16 %v642, %v641
    %659 = vmatprep.subr.bf16.mxu0 0
    %660 = vmatpush1.bf16.msra.mxu0 %v650
    %661 = vmatprep.subr.bf16.mxu0 0
    %662 = vmatpush1.bf16.msra.mxu0 %v649
    %663 = vmatprep.subr.bf16.mxu0 0
    %664 = vmatpush1.bf16.msra.mxu0 %v648
    %665 = vmatprep.subr.bf16.mxu0 0
    %666 = vmatpush1.bf16.msra.mxu0 %v647
    %667 = vmatprep.subr.bf16.mxu0 0
    %668 = vmatpush1.bf16.msra.mxu0 %v646
    %669 = vmatprep.subr.bf16.mxu0 0
    %670 = vmatpush1.bf16.msra.mxu0 %v645
    %671 = vmatprep.subr.bf16.mxu0 0
    %672 = vmatpush1.bf16.msra.mxu0 %v644
    %673 = vmatprep.subr.bf16.mxu0 0
    %674 = vmatpush1.bf16.msra.mxu0 %v643
    %675 = vmatprep.subr.bf16.mxu0 0
    %676 = vmatpush2.bf16.msra.mxu0 0
    %677 = vmatprep.subr.bf16.mxu0 0
    %678 = vmatpush2.bf16.msra.mxu0 0
    %679 = vmatprep.subr.bf16.mxu0 0
    %680 = vmatpush2.bf16.msra.mxu0 0
    %681 = vmatprep.subr.bf16.mxu0 0
    %682 = vmatpush2.bf16.msra.mxu0 0
    %683 = vmatprep.subr.bf16.mxu0 0
    %684 = vmatpush2.bf16.msra.mxu0 0
    %685 = vmatprep.subr.bf16.mxu0 0
    %686 = vmatpush2.bf16.msra.mxu0 0
    %687 = vmatprep.subr.bf16.mxu0 0
    %688 = vmatpush2.bf16.msra.mxu0 0
    %689 = vmatprep.subr.bf16.mxu0 0
    %690 = vmatpush2.bf16.msra.mxu0 0
    %691 = vmatprep.mubr.bf16.mxu0 0
    %692 = vmatmul.mubr.bf16.gmra.mxu0 %v593
    %v693 = vpop.f32.mrf.mxu0
    %v694 = vadd.f32 0.0, %v693
    %v695 = vpop.f32.mrf.mxu0
    %v696 = vpop.f32.mrf.mxu0
    %v697 = vpop.f32.mrf.mxu0
    %698 = vdwg.mxu0
    %699 = vst [vmem:[%s5] sm:$0xff] %v694
    // Predicated region
    $region22: #{dqn_forward.2} parent=1 // pred_check
      _
    $region23: #{dqn_forward.2} parent=1 // pred_check_branch
      %701 = sbr.rel (0) target = $region25
    $region24: #{dqn_forward.2} parent=1 // pred_region
      _
    $region25: #{dqn_forward.2} parent=1 // pred_fallthru
      _
    // Predicated region
    $region26: #{dqn_forward.2} parent=1 // pred_check
      _
    $region27: #{dqn_forward.2} parent=1 // pred_check_branch
      %703 = sbr.rel (0) target = $region29
    $region28: #{dqn_forward.2} parent=1 // pred_region
      _
    $region29: #{dqn_forward.2} parent=1 // pred_fallthru
      _
    %704 = vsyncpa [#allocation8], 1

</llo_original>
